<compile_context>
chip_gen: v7x
topology: tpu7x:2x2x1
jax: 0.10.0
libtpu: 0.0.40
codegen_flags: <defaults>
</compile_context>

<pallas_src>
import functools

import jax
import jax.numpy as jnp
from jax.experimental import pallas as pl
from jax.experimental.pallas import tpu as pltpu

BN_EPS = 1e-5


def _round_up(n, m):
    return (n + m - 1) // m * m


def _default_vmem_limit_bytes():
    """Per-generation scoped-VMEM budget: v5e/v6e have 128 MiB physical, v7x only 64 MiB per TC."""
    try:
        kind = jax.devices()[0].device_kind.lower()
    except Exception:
        kind = ""
    if "v5" in kind or "v6" in kind:
        return 100 * 1024 * 1024
    return 48 * 1024 * 1024          # v7x / unknown: stay safely under 64 MiB physical


def _strided_window_sum(z, window, step, out_len):
    """out[..., p] = sum_{d=0}^{window-1} z[..., p + d*step]   for p in [0, out_len).

    Requires out_len + (window - 1) * step <= z.shape[-1].  LSB-first binary decomposition keeps
    at most two live arrays (running result + current power-of-two partial sum); every slice
    offset is a multiple of `step`, so shifts are lane-aligned whenever step % 128 == 0.
    """
    result = None
    cur = z
    w = 1
    offset = 0
    rem = window
    while rem > 0:
        if rem & 1:
            piece = cur[..., offset * step: offset * step + out_len]
            result = piece if result is None else result + piece
            offset += w
        rem >>= 1
        if rem > 0:
            n = cur.shape[-1] - w * step
            cur = cur[..., :n] + cur[..., w * step: w * step + n]
            w *= 2
    return result


def _shallow_conv_kernel(
    x_ref,     # (1, C, L*BB)   input tile, t-major lanes: column t*BB + b   (compute dtype)
    w_ref,     # (G, K*C)       fused convt+convs+BN-scale weights           (compute dtype)
    b_ref,     # (G, 1)         fused bias + BN shift                        (f32)
    wf_ref,    # (G, T2*BB)     final conv weights repeated per-batch lane   (f32)
    out_ref,   # (1, 1, BB)     one scalar per batch element, lane-dense
    *,
    kernel_size: int,
    avgpool_kernel: int,
    bb: int,
    t1: int,
    t2: int,
    tap_chunk: int,
):
    K, P, BB = kernel_size, avgpool_kernel, bb
    C = x_ref.shape[1]
    nv = BB * t1

    x = x_ref[0]                       # (C, L*BB)
    w = w_ref[...]                     # (G, K*C)

    # --- fused convt+convs+BN(scale): lane-wise im2col + one MXU matmul per tap chunk ---
    # xcol[k*C + c, t*BB + b] = x[c, (t+k)*BB + b]; each tap is a lane slice at offset k*BB.
    y = None
    for k0 in range(0, K, tap_chunk):
        kc = min(tap_chunk, K - k0)
        if kc == 1:
            cols = x[:, k0 * BB: k0 * BB + nv]
        else:
            cols = jnp.concatenate(
                [x[:, (k0 + j) * BB: (k0 + j) * BB + nv] for j in range(kc)], axis=0)
        part = jnp.dot(w[:, k0 * C:(k0 + kc) * C], cols,
                       preferred_element_type=jnp.float32)        # (G, BB*T1) f32
        y = part if y is None else y + part
    y = y + b_ref[...]                                             # (G, 1) broadcast over lanes

    # --- square (VPU, f32) ---
    z = y * y

    # --- AvgPool2d((1,P), stride=(P//2,1)) on a height-1 map == stride-1 mean over time ---
    pooled = _strided_window_sum(z, P, BB, BB * t2) * (1.0 / P)    # (G, BB*T2)

    # --- safeLog ---
    logged = jnp.log(jnp.maximum(pooled, 1e-6))

    # --- dropout: identity at inference ---
    # --- final Conv2d(F, 1, (1, T2)): reduce over g (sublanes), then over t (lane tree) ---
    contrib = jnp.sum(logged * wf_ref[...], axis=0, keepdims=True)  # (1, BB*T2)
    out_ref[0] = _strided_window_sum(contrib, t2, BB, BB)           # (1, BB)


def _pick_tiling(B, C, L, K, G, T1, T2, cbytes, vmem_limit):
    """Choose (batch tile BB, im2col tap chunk) from a per-stage VMEM model."""
    c8 = _round_up(max(C, 1), 8)
    g8 = _round_up(max(G, 1), 8)

    def per_batch_bytes(tap_chunk):
        kc8 = _round_up(tap_chunk * C, 8)
        x_tile = 2 * c8 * L * cbytes                               # double-buffered input tile
        conv = x_tile + 2 * kc8 * T1 * cbytes + 2 * g8 * T1 * 4    # im2col chunk + f32 accum
        pool = x_tile + 3 * g8 * T1 * 4 + 2 * g8 * T2 * 4          # square + pooling tree
        tail = x_tile + 3 * g8 * T2 * 4 + 2 * 8 * T2 * 4           # logged * wf + reduction rows
        return max(conv, pool, tail)

    budget = int(0.55 * vmem_limit)
    tap_chunk = K
    bb = max(1, budget // per_batch_bytes(tap_chunk))
    # If the full im2col caps the batch tile, trade contraction width for a bigger BB
    # (a bigger batch tile amortises the ~0.35 us/step grid overhead and fills the lanes).
    while bb < 64 and tap_chunk > 1:
        tap_chunk = max(1, tap_chunk // 2)
        bb = max(1, budget // per_batch_bytes(tap_chunk))
    bb = int(min(bb, 1024))
    if bb >= B:
        return B, tap_chunk            # single grid step, no batch padding / alignment concerns
    if bb >= 128:
        bb = (bb // 128) * 128         # lane-aligned tap/pool shift offsets (multiples of BB)
    else:
        bb = max(8, (bb // 8) * 8)
    return bb, tap_chunk


def shallow_conv_forward(x5d, params, *, avgpool_kernel, compute_dtype=jnp.bfloat16,
                         batch_block=None, tap_chunk=None, vmem_limit_bytes=None):
    """x5d: (1, B, 1, chnNum, length).  Returns torch.squeeze(output) semantics ((B,) for B>1)."""
    wt, bt, ws, bs, gamma, beta, r_mean, r_var, wf, bf = params

    x = jnp.squeeze(x5d, axis=0)                      # (B, 1, C, L) == torch.squeeze(x, dim=0)
    x3 = x[:, 0, :, :].astype(jnp.float32)            # (B, C, L)
    B, C, L = x3.shape
    F, _, _, K = wt.shape
    T1 = L - K + 1
    P = avgpool_kernel
    T2 = T1 - P + 1
    G = F

    # ---- parameter glue (plain JAX, f32): fuse convt + convs + BatchNorm(eval) ----
    wt2 = wt.reshape(F, K).astype(jnp.float32)        # (F, K)
    ws3 = ws[:, :, :, 0].astype(jnp.float32)          # (G, F, C)
    bt1 = bt.astype(jnp.float32)
    bs1 = bs.astype(jnp.float32)
    w_comb = jnp.einsum('gfc,fk->gck', ws3, wt2)      # (G, C, K)
    b_comb = bs1 + jnp.einsum('gfc,f->g', ws3, bt1)   # (G,)
    scale = (gamma / jnp.sqrt(r_var + BN_EPS)).astype(jnp.float32)
    shift = (beta - r_mean * scale).astype(jnp.float32)
    w_bn = w_comb * scale[:, None, None]              # fold BN scale into the conv weights
    b_bn = b_comb * scale + shift                     # fold BN shift into the conv bias
    # flatten taps (k, c) -> column k*C + c to match the kernel's im2col row order
    w_flat = jnp.transpose(w_bn, (0, 2, 1)).reshape(G, K * C)

    wf2 = wf.reshape(G, T2).astype(jnp.float32)       # final conv weights
    bf0 = bf.reshape(()).astype(jnp.float32)          # final conv bias (folded in the wrapper)

    # ---- tiling: batch tile BB and im2col chunk sized from a per-generation VMEM budget ----
    vmem_limit = _default_vmem_limit_bytes() if vmem_limit_bytes is None else int(vmem_limit_bytes)
    cbytes = jnp.dtype(compute_dtype).itemsize
    auto_bb, auto_tap = _pick_tiling(B, C, L, K, G, T1, T2, cbytes, vmem_limit)
    BB = max(1, int(batch_block)) if batch_block is not None else auto_bb
    TAP = max(1, min(int(tap_chunk), K)) if tap_chunk is not None else auto_tap
    nblocks = pl.cdiv(B, BB)
    B_pad = nblocks * BB

    # ---- input layout: t-major lanes.  x_in[i, c, t*BB + b] = x[i*BB + b, c, t] ----
    if B_pad != B:
        x3 = jnp.pad(x3, ((0, B_pad - B), (0, 0), (0, 0)))
    x_in = (x3.reshape(nblocks, BB, C, L)
               .transpose(0, 2, 3, 1)
               .reshape(nblocks, C, L * BB)
               .astype(compute_dtype))
    w_in = w_flat.astype(compute_dtype)               # bf16 operands halve DMA / im2col footprint
    b_in = b_bn.reshape(G, 1)
    wf_tiled = jnp.repeat(wf2, BB, axis=1)            # (G, T2*BB): column t*BB + b -> wf2[g, t]

    kernel = functools.partial(
        _shallow_conv_kernel, kernel_size=K, avgpool_kernel=P,
        bb=BB, t1=T1, t2=T2, tap_chunk=TAP)

    out = pl.pallas_call(
        kernel,
        out_shape=jax.ShapeDtypeStruct((nblocks, 1, BB), jnp.float32),
        grid_spec=pltpu.PrefetchScalarGridSpec(
            num_scalar_prefetch=0,
            grid=(nblocks,),
            in_specs=[
                pl.BlockSpec((1, C, L * BB), lambda i: (i, 0, 0)),   # x: tiled over batch blocks
                pl.BlockSpec((G, K * C), lambda i: (0, 0)),          # fused weights (resident)
                pl.BlockSpec((G, 1), lambda i: (0, 0)),              # fused bias
                pl.BlockSpec((G, T2 * BB), lambda i: (0, 0)),        # per-lane final conv weights
            ],
            out_specs=pl.BlockSpec((1, 1, BB), lambda i: (i, 0, 0)), # lane-dense batch scalars
        ),
        compiler_params=pltpu.CompilerParams(
            # "parallel" lets batch blocks be sharded across TensorCores on multi-core parts
            # (v7x); single-core v5e/v6e are unaffected.
            dimension_semantics=("parallel",),
            vmem_limit_bytes=int(vmem_limit),
        ),
    )(x_in, w_in, b_in, wf_tiled)

    result = out.reshape(B_pad)[:B] + bf0             # final conv bias folded here (no bf_ref DMA)
    return jnp.squeeze(result)                        # matches torch.squeeze(output)


def reference_forward(x5d, params, *, avgpool_kernel):
    """Pure-JAX reference (lax convs) with identical semantics, for verification."""
    wt, bt, ws, bs, gamma, beta, r_mean, r_var, wf, bf = params
    x = jnp.squeeze(x5d, axis=0)                      # (B, 1, C, L)
    dn = ("NCHW", "OIHW", "NCHW")

    y = jax.lax.conv_general_dilated(x, wt, (1, 1), "VALID", dimension_numbers=dn)
    y = y + bt.reshape(1, -1, 1, 1)
    y = jax.lax.conv_general_dilated(y, ws, (1, 1), "VALID", dimension_numbers=dn)
    y = y + bs.reshape(1, -1, 1, 1)
    y = (y - r_mean.reshape(1, -1, 1, 1)) / jnp.sqrt(r_var.reshape(1, -1, 1, 1) + BN_EPS)
    y = y * gamma.reshape(1, -1, 1, 1) + beta.reshape(1, -1, 1, 1)
    y = y * y
    P = avgpool_kernel
    y = jax.lax.reduce_window(
        y, 0.0, jax.lax.add,
        window_dimensions=(1, 1, 1, P),
        window_strides=(1, 1, P // 2, 1),
        padding="VALID",
    ) / P
    y = jnp.log(jnp.maximum(y, 1e-6))
    y = jax.lax.conv_general_dilated(y, wf, (1, 1), "VALID", dimension_numbers=dn)
    y = y + bf.reshape(1, -1, 1, 1)
    return jnp.squeeze(y)


if __name__ == "__main__":
    # Small, shape-consistent configuration.
    B = 16         # batch
    C = 4          # chnNum
    L = 64         # length
    F = 8          # convfeature
    K = 8          # kernelSize
    P = 8          # avgpoolKernel
    # dropout = 0.25  (identity at inference)
    T1 = L - K + 1
    T2 = T1 - P + 1

    key = jax.random.PRNGKey(0)
    ks = jax.random.split(key, 12)

    wt = 0.2 * jax.random.normal(ks[0], (F, 1, 1, K), jnp.float32)
    bt = 0.1 * jax.random.normal(ks[1], (F,), jnp.float32)
    ws = 0.2 * jax.random.normal(ks[2], (F, F, C, 1), jnp.float32)
    bs = 0.1 * jax.random.normal(ks[3], (F,), jnp.float32)
    gamma = 1.0 + 0.1 * jax.random.normal(ks[4], (F,), jnp.float32)
    beta = 0.1 * jax.random.normal(ks[5], (F,), jnp.float32)
    r_mean = 0.1 * jax.random.normal(ks[6], (F,), jnp.float32)
    r_var = jax.random.uniform(ks[7], (F,), jnp.float32, minval=0.5, maxval=1.5)
    wf = 0.1 * jax.random.normal(ks[8], (1, F, 1, T2), jnp.float32)
    bf = 0.1 * jax.random.normal(ks[9], (1,), jnp.float32)
    params = (wt, bt, ws, bs, gamma, beta, r_mean, r_var, wf, bf)

    x = jax.random.normal(ks[10], (1, B, 1, C, L), jnp.float32)
    ref = jax.block_until_ready(reference_forward(x, params, avgpool_kernel=P))

    # 1) f32 operands, auto tiling (single batch block) — tight check vs the lax-conv reference.
    out_f32 = jax.block_until_ready(
        shallow_conv_forward(x, params, avgpool_kernel=P, compute_dtype=jnp.float32))
    assert out_f32.shape == (B,), out_f32.shape
    assert jnp.allclose(out_f32, ref, rtol=2e-3, atol=2e-3), (out_f32, ref)

    # 2) default bf16 MXU operands (f32 accumulate / f32 elementwise) — loose check.
    out_bf16 = jax.block_until_ready(
        shallow_conv_forward(x, params, avgpool_kernel=P))
    assert out_bf16.shape == (B,), out_bf16.shape
    assert jnp.allclose(out_bf16, ref, rtol=1e-1, atol=1e-1), (out_bf16, ref)

    # 3) multi-block grid + batch padding + chunked im2col (tap_chunk does not divide K).
    B2 = 10
    x2 = jax.random.normal(ks[11], (1, B2, 1, C, L), jnp.float32)
    ref2 = jax.block_until_ready(reference_forward(x2, params, avgpool_kernel=P))
    out2 = jax.block_until_ready(
        shallow_conv_forward(x2, params, avgpool_kernel=P, compute_dtype=jnp.float32,
                             batch_block=4, tap_chunk=3))
    assert out2.shape == (B2,), out2.shape
    assert jnp.allclose(out2, ref2, rtol=2e-3, atol=2e-3), (out2, ref2)

    print("KERNEL_OK")
</pallas_src>

<mosaic_0001>
module attributes {stable_mosaic.version = 11 : i64} {
  func.func @_shallow_conv_kernel(%arg0: i32, %arg1: memref<1x4x1024xf32, #tpu.memory_space<vmem>>, %arg2: memref<8x32xf32, #tpu.memory_space<vmem>>, %arg3: memref<8x1xf32, #tpu.memory_space<vmem>>, %arg4: memref<8x800xf32, #tpu.memory_space<vmem>>, %arg5: memref<1x1x16xf32, #tpu.memory_space<vmem>>) attributes {dimension_semantics = [#tpu.dimension_semantics<parallel>], iteration_bounds = array<i64: 1>, scalar_prefetch = 0 : i64, scratch_operands = 0 : i64, tpu.core_type = #tpu.core_type<tc>, window_params = [{transform_indices = @transform_0, window_bounds = array<i64: 1, 4, 1024>}, {pipeline_mode = #tpu.pipeline_mode<synchronous>, transform_indices = @transform_1, window_bounds = array<i64: 8, 32>}, {pipeline_mode = #tpu.pipeline_mode<synchronous>, transform_indices = @transform_2, window_bounds = array<i64: 8, 1>}, {pipeline_mode = #tpu.pipeline_mode<synchronous>, transform_indices = @transform_3, window_bounds = array<i64: 8, 800>}, {transform_indices = @transform_4, window_bounds = array<i64: 1, 1, 16>}]} {
    %c0 = arith.constant 0 : index
    %c0_0 = arith.constant 0 : index
    %c0_1 = arith.constant 0 : index
    %0 = vector.load %arg1[%c0, %c0_0, %c0_1] : memref<1x4x1024xf32, #tpu.memory_space<vmem>>, vector<1x4x1024xf32>
    %1 = vector.shape_cast %0 : vector<1x4x1024xf32> to vector<4x1024xf32>
    %c0_2 = arith.constant 0 : index
    %c0_3 = arith.constant 0 : index
    %2 = vector.load %arg2[%c0_2, %c0_3] : memref<8x32xf32, #tpu.memory_space<vmem>>, vector<8x32xf32>
    %3 = vector.extract_strided_slice %1 {offsets = [0, 0], sizes = [4, 912], strides = [1, 1]} : vector<4x1024xf32> to vector<4x912xf32>
    %4 = vector.extract_strided_slice %1 {offsets = [0, 16], sizes = [4, 912], strides = [1, 1]} : vector<4x1024xf32> to vector<4x912xf32>
    %5 = vector.extract_strided_slice %1 {offsets = [0, 32], sizes = [4, 912], strides = [1, 1]} : vector<4x1024xf32> to vector<4x912xf32>
    %6 = vector.extract_strided_slice %1 {offsets = [0, 48], sizes = [4, 912], strides = [1, 1]} : vector<4x1024xf32> to vector<4x912xf32>
    %7 = vector.extract_strided_slice %1 {offsets = [0, 64], sizes = [4, 912], strides = [1, 1]} : vector<4x1024xf32> to vector<4x912xf32>
    %8 = vector.extract_strided_slice %1 {offsets = [0, 80], sizes = [4, 912], strides = [1, 1]} : vector<4x1024xf32> to vector<4x912xf32>
    %9 = vector.extract_strided_slice %1 {offsets = [0, 96], sizes = [4, 912], strides = [1, 1]} : vector<4x1024xf32> to vector<4x912xf32>
    %10 = vector.extract_strided_slice %1 {offsets = [0, 112], sizes = [4, 912], strides = [1, 1]} : vector<4x1024xf32> to vector<4x912xf32>
    %11 = tpu.concatenate %3, %4, %5, %6, %7, %8, %9, %10 in 0 : vector<4x912xf32>, vector<4x912xf32>, vector<4x912xf32>, vector<4x912xf32>, vector<4x912xf32>, vector<4x912xf32>, vector<4x912xf32>, vector<4x912xf32> -> vector<32x912xf32>
    %cst = arith.constant dense<0.000000e+00> : vector<8x912xf32>
    %12 = tpu.matmul %2, %11, %cst {dimension_numbers = #tpu.dot_dimension_numbers<[1], [0], [0], [1], [0, 0, 1, 1], [], []>} : vector<8x32xf32>, vector<32x912xf32>, vector<8x912xf32> -> vector<8x912xf32>
    %c0_4 = arith.constant 0 : index
    %c0_5 = arith.constant 0 : index
    %13 = vector.load %arg3[%c0_4, %c0_5] : memref<8x1xf32, #tpu.memory_space<vmem>>, vector<8x1xf32>
    %14 = vector.broadcast %13 : vector<8x1xf32> to vector<8x912xf32>
    %15 = arith.addf %12, %14 : vector<8x912xf32>
    %16 = arith.mulf %15, %15 : vector<8x912xf32>
    %17 = vector.extract_strided_slice %16 {offsets = [0, 0], sizes = [8, 896], strides = [1, 1]} : vector<8x912xf32> to vector<8x896xf32>
    %18 = vector.extract_strided_slice %16 {offsets = [0, 16], sizes = [8, 896], strides = [1, 1]} : vector<8x912xf32> to vector<8x896xf32>
    %19 = arith.addf %17, %18 : vector<8x896xf32>
    %20 = vector.extract_strided_slice %19 {offsets = [0, 0], sizes = [8, 864], strides = [1, 1]} : vector<8x896xf32> to vector<8x864xf32>
    %21 = vector.extract_strided_slice %19 {offsets = [0, 32], sizes = [8, 864], strides = [1, 1]} : vector<8x896xf32> to vector<8x864xf32>
    %22 = arith.addf %20, %21 : vector<8x864xf32>
    %23 = vector.extract_strided_slice %22 {offsets = [0, 0], sizes = [8, 800], strides = [1, 1]} : vector<8x864xf32> to vector<8x800xf32>
    %24 = vector.extract_strided_slice %22 {offsets = [0, 64], sizes = [8, 800], strides = [1, 1]} : vector<8x864xf32> to vector<8x800xf32>
    %25 = arith.addf %23, %24 : vector<8x800xf32>
    %cst_6 = arith.constant 1.250000e-01 : f32
    %26 = vector.broadcast %cst_6 : f32 to vector<8x800xf32>
    %27 = arith.mulf %25, %26 : vector<8x800xf32>
    %cst_7 = arith.constant 9.99999997E-7 : f32
    %28 = vector.broadcast %cst_7 : f32 to vector<8x800xf32>
    %29 = arith.maximumf %27, %28 : vector<8x800xf32>
    %30 = math.log %29 : vector<8x800xf32>
    %c0_8 = arith.constant 0 : index
    %c0_9 = arith.constant 0 : index
    %31 = vector.load %arg4[%c0_8, %c0_9] : memref<8x800xf32, #tpu.memory_space<vmem>>, vector<8x800xf32>
    %32 = arith.mulf %30, %31 : vector<8x800xf32>
    %cst_10 = arith.constant dense<0.000000e+00> : vector<800xf32>
    %33 = vector.multi_reduction <add>, %32, %cst_10 [0] : vector<8x800xf32> to vector<800xf32>
    %34 = vector.shape_cast %33 : vector<800xf32> to vector<1x800xf32>
    %35 = vector.extract_strided_slice %34 {offsets = [0, 0], sizes = [1, 784], strides = [1, 1]} : vector<1x800xf32> to vector<1x784xf32>
    %36 = vector.extract_strided_slice %34 {offsets = [0, 16], sizes = [1, 784], strides = [1, 1]} : vector<1x800xf32> to vector<1x784xf32>
    %37 = arith.addf %35, %36 : vector<1x784xf32>
    %38 = vector.extract_strided_slice %37 {offsets = [0, 0], sizes = [1, 16], strides = [1, 1]} : vector<1x784xf32> to vector<1x16xf32>
    %39 = vector.extract_strided_slice %37 {offsets = [0, 0], sizes = [1, 752], strides = [1, 1]} : vector<1x784xf32> to vector<1x752xf32>
    %40 = vector.extract_strided_slice %37 {offsets = [0, 32], sizes = [1, 752], strides = [1, 1]} : vector<1x784xf32> to vector<1x752xf32>
    %41 = arith.addf %39, %40 : vector<1x752xf32>
    %42 = vector.extract_strided_slice %41 {offsets = [0, 0], sizes = [1, 688], strides = [1, 1]} : vector<1x752xf32> to vector<1x688xf32>
    %43 = vector.extract_strided_slice %41 {offsets = [0, 64], sizes = [1, 688], strides = [1, 1]} : vector<1x752xf32> to vector<1x688xf32>
    %44 = arith.addf %42, %43 : vector<1x688xf32>
    %45 = vector.extract_strided_slice %44 {offsets = [0, 0], sizes = [1, 560], strides = [1, 1]} : vector<1x688xf32> to vector<1x560xf32>
    %46 = vector.extract_strided_slice %44 {offsets = [0, 128], sizes = [1, 560], strides = [1, 1]} : vector<1x688xf32> to vector<1x560xf32>
    %47 = arith.addf %45, %46 : vector<1x560xf32>
    %48 = vector.extract_strided_slice %47 {offsets = [0, 32], sizes = [1, 16], strides = [1, 1]} : vector<1x560xf32> to vector<1x16xf32>
    %49 = arith.addf %38, %48 : vector<1x16xf32>
    %50 = vector.extract_strided_slice %47 {offsets = [0, 0], sizes = [1, 304], strides = [1, 1]} : vector<1x560xf32> to vector<1x304xf32>
    %51 = vector.extract_strided_slice %47 {offsets = [0, 256], sizes = [1, 304], strides = [1, 1]} : vector<1x560xf32> to vector<1x304xf32>
    %52 = arith.addf %50, %51 : vector<1x304xf32>
    %53 = vector.extract_strided_slice %52 {offsets = [0, 288], sizes = [1, 16], strides = [1, 1]} : vector<1x304xf32> to vector<1x16xf32>
    %54 = arith.addf %49, %53 : vector<1x16xf32>
    %c0_11 = arith.constant 0 : index
    %c0_12 = arith.constant 0 : index
    %c0_13 = arith.constant 0 : index
    %55 = vector.load %arg5[%c0_11, %c0_12, %c0_13] : memref<1x1x16xf32, #tpu.memory_space<vmem>>, vector<1x1x16xf32>
    %56 = vector.shape_cast %55 : vector<1x1x16xf32> to vector<1x16xf32>
    %57 = vector.shape_cast %54 : vector<1x16xf32> to vector<1x1x16xf32>
    tpu.vector_store %arg5[%c0_11, %c0_12, %c0_13], %57 {strides = array<i32>} : memref<1x1x16xf32, #tpu.memory_space<vmem>>, vector<1x1x16xf32>,
    return
  }
  func.func @transform_0(%arg0: i32) -> (i32, i32, i32) {
    %c0_i32 = arith.constant 0 : i32
    %c0_i32_0 = arith.constant 0 : i32
    %c0_i32_1 = arith.constant 0 : i32
    return %arg0, %c0_i32, %c0_i32_0 : i32, i32, i32
  }
  func.func @transform_1(%arg0: i32) -> (i32, i32) {
    %c0_i32 = arith.constant 0 : i32
    %c0_i32_0 = arith.constant 0 : i32
    %c0_i32_1 = arith.constant 0 : i32
    return %c0_i32, %c0_i32_0 : i32, i32
  }
  func.func @transform_2(%arg0: i32) -> (i32, i32) {
    %c0_i32 = arith.constant 0 : i32
    %c0_i32_0 = arith.constant 0 : i32
    %c0_i32_1 = arith.constant 0 : i32
    return %c0_i32, %c0_i32_0 : i32, i32
  }
  func.func @transform_3(%arg0: i32) -> (i32, i32) {
    %c0_i32 = arith.constant 0 : i32
    %c0_i32_0 = arith.constant 0 : i32
    %c0_i32_1 = arith.constant 0 : i32
    return %c0_i32, %c0_i32_0 : i32, i32
  }
  func.func @transform_4(%arg0: i32) -> (i32, i32, i32) {
    %c0_i32 = arith.constant 0 : i32
    %c0_i32_0 = arith.constant 0 : i32
    %c0_i32_1 = arith.constant 0 : i32
    return %arg0, %c0_i32, %c0_i32_0 : i32, i32, i32
  }
}

</mosaic_0001>

<llo_original>
// kernel: tpu_custom_call.1
$region0: #{tpu_custom_call.1}
  #allocation0 [shape = 'u32[]', space=smem, size = 0x4, offset = 0x4, fixed_abs, tag = 'smem constant byte address 0x4 - core index']
  #allocation1 [shape = 'u32[144,128]{1,0:T(1,128)}', space=vmem, size = 0x12000, scoped, tag = 'internal scratch']
  %s0 = inlined_call_operand.hbm [shape: f32[1,4,1024], index: 0, kind: input, shape index: {}]
  %s1 = inlined_call_operand.vmem [shape: f32[8,32], index: 1, kind: input, shape index: {}]
  %s2 = inlined_call_operand.vmem [shape: f32[8,1], index: 2, kind: input, shape index: {}]
  %s3 = inlined_call_operand.hbm [shape: f32[8,800], index: 3, kind: input, shape index: {}]
  %s4 = inlined_call_operand.hbm [shape: f32[1,1,16], index: 4, kind: output, shape index: {}]
  %s5 = sld [smem:[#allocation0]]
  $region34: #{tpu_custom_call.1} parent=0
    _
  %s7 = ssub.s32 1, %s5
  %s8 = scalar_select 0, %s7, %s5
  $region1: #{tpu_custom_call.1} parent=0
    #allocation2 [shape = 'u8[16384]{0}', space=vmem, size = 0x4000, scoped, tag = 'input window, operand 0, single buffered']
    #allocation3 [shape = 's32[1]{0}', space=sflag, size = 0x4, scoped, tag = 'scoped memory for tpu_custom_call.1']
    #allocation4 [shape = 's32[1]{0}', space=sflag, size = 0x4, scoped, tag = 'scoped memory for tpu_custom_call.1']
    #allocation5 [shape = 'u8[28672]{0}', space=vmem, size = 0x7000, scoped, tag = 'input window, operand 3, single buffered']
    #allocation6 [shape = 's32[1]{0}', space=sflag, size = 0x4, scoped, tag = 'scoped memory for tpu_custom_call.1']
    #allocation7 [shape = 'u8[512]{0}', space=vmem, size = 0x400, scoped, tag = 'output window, operand 0, single buffered']
    %9 = vsyncpa [#allocation3], 0
    %10 = vsyncpa [#allocation6], 0
    %11 = vsyncpa [#allocation4], 0
    // Predicated region
    $region2: #{tpu_custom_call.1} parent=1 // pred_check
      _
    $region3: #{tpu_custom_call.1} parent=1 // pred_check_branch
      %13 = sbr.rel (0) target = $region5
    $region4: #{tpu_custom_call.1} parent=1 // pred_region
      %s15 = ssub.s32 512, 512
      %16 = vsyncadd [#allocation3], %s15
      %s18 = sshll.u32 [#allocation2], 4
      %s19 = int_to_ptr.vmem [resolvable:$true] %s18
      %21 = dma.hbm_to_vmem [thread:$0]  %s0, 512, %s19, [#allocation3]
    $region5: #{tpu_custom_call.1} parent=1 // pred_fallthru
      _
    // Predicated region
    $region6: #{tpu_custom_call.1} parent=1 // pred_check
      _
    $region7: #{tpu_custom_call.1} parent=1 // pred_check_branch
      %23 = sbr.rel (0) target = $region9
    $region8: #{tpu_custom_call.1} parent=1 // pred_region
      _
    $region9: #{tpu_custom_call.1} parent=1 // pred_fallthru
      _
    // Predicated region
    $region10: #{tpu_custom_call.1} parent=1 // pred_check
      _
    $region11: #{tpu_custom_call.1} parent=1 // pred_check_branch
      %25 = sbr.rel (0) target = $region13
    $region12: #{tpu_custom_call.1} parent=1 // pred_region
      _
    $region13: #{tpu_custom_call.1} parent=1 // pred_fallthru
      _
    // Predicated region
    $region14: #{tpu_custom_call.1} parent=1 // pred_check
      _
    $region15: #{tpu_custom_call.1} parent=1 // pred_check_branch
      %27 = sbr.rel (0) target = $region17
    $region16: #{tpu_custom_call.1} parent=1 // pred_region
      %s29 = ssub.s32 896, 896
      %30 = vsyncadd [#allocation6], %s29
      %s32 = sshll.u32 [#allocation5], 4
      %s33 = int_to_ptr.vmem [resolvable:$true] %s32
      %35 = dma.hbm_to_vmem [thread:$0]  %s3, 896, %s33, [#allocation6]
    $region17: #{tpu_custom_call.1} parent=1 // pred_fallthru
      _
    // Predicated region
    $region18: #{tpu_custom_call.1} parent=1 // pred_check
      _
    $region19: #{tpu_custom_call.1} parent=1 // pred_check_branch
      %37 = sbr.rel (0) target = $region21
    $region20: #{tpu_custom_call.1} parent=1 // pred_region
      %38 = dma.done [#allocation3], 512
    $region21: #{tpu_custom_call.1} parent=1 // pred_fallthru
      _
    // Predicated region
    $region22: #{tpu_custom_call.1} parent=1 // pred_check
      _
    $region23: #{tpu_custom_call.1} parent=1 // pred_check_branch
      %40 = sbr.rel (0) target = $region25
    $region24: #{tpu_custom_call.1} parent=1 // pred_region
      %41 = dma.done [#allocation6], 896
    $region25: #{tpu_custom_call.1} parent=1 // pred_fallthru
      _
    %v42 = vld [vmem:[#allocation2] sm:$0xff]
    %v43 = vld [vmem:[#allocation2 + $0x8] sm:$0xff]
    %v44 = vld [vmem:[#allocation2 + $0x10] sm:$0xff]
    %v45 = vld [vmem:[#allocation2 + $0x18] sm:$0xff]
    %v46 = vld [vmem:[%s1] sm:$0xff]
    %v51 = vcombine.high %v42, %v42
    %v52 = vcombine.high %v43, %v43
    %v53 = vcombine.high %v44, %v44
    %v54 = vcombine.high %v45, %v45
    %v59 = vcombine.low %v42, %v42
    %v60 = vcombine.low %v43, %v43
    %v61 = vcombine.low %v44, %v44
    %v62 = vcombine.low %v45, %v45
    %63 = vrot.lane.b32.xlu0 %v59, 112
    %v64 = vpop.permute.xlu0 %63
    %65 = vrot.lane.b32.xlu0 %v42, 112
    %v66 = vpop.permute.xlu0 %65
    %67 = vrot.lane.b32.xlu0 %v60, 112
    %v68 = vpop.permute.xlu0 %67
    %69 = vrot.lane.b32.xlu0 %v43, 112
    %v70 = vpop.permute.xlu0 %69
    %71 = vrot.lane.b32.xlu0 %v61, 112
    %v72 = vpop.permute.xlu0 %71
    %73 = vrot.lane.b32.xlu0 %v44, 112
    %v74 = vpop.permute.xlu0 %73
    %75 = vrot.lane.b32.xlu0 %v62, 112
    %v76 = vpop.permute.xlu0 %75
    %77 = vrot.lane.b32.xlu0 %v45, 112
    %v78 = vpop.permute.xlu0 %77
    %vm79 = vcmask 916480
    %v80 = vsel %vm79, %v64, %v66
    %v81 = vsel %vm79, %v66, %v68
    %v82 = vsel %vm79, %v68, %v70
    %v83 = vsel %vm79, %v70, %v72
    %v84 = vsel %vm79, %v72, %v74
    %v85 = vsel %vm79, %v74, %v76
    %v86 = vsel %vm79, %v76, %v78
    %95 = vrot.lane.b32.xlu0 %v42, 96
    %v96 = vpop.permute.xlu0 %95
    %97 = vrot.lane.b32.xlu0 %v51, 96
    %v98 = vpop.permute.xlu0 %97
    %99 = vrot.lane.b32.xlu0 %v43, 96
    %v100 = vpop.permute.xlu0 %99
    %101 = vrot.lane.b32.xlu0 %v52, 96
    %v102 = vpop.permute.xlu0 %101
    %103 = vrot.lane.b32.xlu0 %v44, 96
    %v104 = vpop.permute.xlu0 %103
    %105 = vrot.lane.b32.xlu0 %v53, 96
    %v106 = vpop.permute.xlu0 %105
    %107 = vrot.lane.b32.xlu0 %v45, 96
    %v108 = vpop.permute.xlu0 %107
    %109 = vrot.lane.b32.xlu0 %v54, 96
    %v110 = vpop.permute.xlu0 %109
    %vm111 = vcmask 785408
    %v112 = vsel %vm111, %v96, %v98
    %v113 = vsel %vm111, %v98, %v100
    %v114 = vsel %vm111, %v100, %v102
    %v115 = vsel %vm111, %v102, %v104
    %v116 = vsel %vm111, %v104, %v106
    %v117 = vsel %vm111, %v106, %v108
    %v118 = vsel %vm111, %v108, %v110
    %127 = vrot.lane.b32.xlu0 %v59, 80
    %v128 = vpop.permute.xlu0 %127
    %129 = vrot.lane.b32.xlu0 %v42, 80
    %v130 = vpop.permute.xlu0 %129
    %131 = vrot.lane.b32.xlu0 %v60, 80
    %v132 = vpop.permute.xlu0 %131
    %133 = vrot.lane.b32.xlu0 %v43, 80
    %v134 = vpop.permute.xlu0 %133
    %135 = vrot.lane.b32.xlu0 %v61, 80
    %v136 = vpop.permute.xlu0 %135
    %137 = vrot.lane.b32.xlu0 %v44, 80
    %v138 = vpop.permute.xlu0 %137
    %139 = vrot.lane.b32.xlu0 %v62, 80
    %v140 = vpop.permute.xlu0 %139
    %141 = vrot.lane.b32.xlu0 %v45, 80
    %v142 = vpop.permute.xlu0 %141
    %vm143 = vcmask 654336
    %v144 = vsel %vm143, %v128, %v130
    %v145 = vsel %vm143, %v130, %v132
    %v146 = vsel %vm143, %v132, %v134
    %v147 = vsel %vm143, %v134, %v136
    %v148 = vsel %vm143, %v136, %v138
    %v149 = vsel %vm143, %v138, %v140
    %v150 = vsel %vm143, %v140, %v142
    %159 = vrot.lane.b32.xlu0 %v42, 64
    %v160 = vpop.permute.xlu0 %159
    %161 = vrot.lane.b32.xlu0 %v51, 64
    %v162 = vpop.permute.xlu0 %161
    %163 = vrot.lane.b32.xlu0 %v43, 64
    %v164 = vpop.permute.xlu0 %163
    %165 = vrot.lane.b32.xlu0 %v52, 64
    %v166 = vpop.permute.xlu0 %165
    %167 = vrot.lane.b32.xlu0 %v44, 64
    %v168 = vpop.permute.xlu0 %167
    %169 = vrot.lane.b32.xlu0 %v53, 64
    %v170 = vpop.permute.xlu0 %169
    %171 = vrot.lane.b32.xlu0 %v45, 64
    %v172 = vpop.permute.xlu0 %171
    %173 = vrot.lane.b32.xlu0 %v54, 64
    %v174 = vpop.permute.xlu0 %173
    %vm175 = vcmask 523264
    %v176 = vsel %vm175, %v160, %v162
    %v177 = vsel %vm175, %v162, %v164
    %v178 = vsel %vm175, %v164, %v166
    %v179 = vsel %vm175, %v166, %v168
    %v180 = vsel %vm175, %v168, %v170
    %v181 = vsel %vm175, %v170, %v172
    %v182 = vsel %vm175, %v172, %v174
    %191 = vrot.lane.b32.xlu0 %v59, 48
    %v192 = vpop.permute.xlu0 %191
    %193 = vrot.lane.b32.xlu0 %v42, 48
    %v194 = vpop.permute.xlu0 %193
    %195 = vrot.lane.b32.xlu0 %v60, 48
    %v196 = vpop.permute.xlu0 %195
    %197 = vrot.lane.b32.xlu0 %v43, 48
    %v198 = vpop.permute.xlu0 %197
    %199 = vrot.lane.b32.xlu0 %v61, 48
    %v200 = vpop.permute.xlu0 %199
    %201 = vrot.lane.b32.xlu0 %v44, 48
    %v202 = vpop.permute.xlu0 %201
    %203 = vrot.lane.b32.xlu0 %v62, 48
    %v204 = vpop.permute.xlu0 %203
    %205 = vrot.lane.b32.xlu0 %v45, 48
    %v206 = vpop.permute.xlu0 %205
    %vm207 = vcmask 392192
    %v208 = vsel %vm207, %v192, %v194
    %v209 = vsel %vm207, %v194, %v196
    %v210 = vsel %vm207, %v196, %v198
    %v211 = vsel %vm207, %v198, %v200
    %v212 = vsel %vm207, %v200, %v202
    %v213 = vsel %vm207, %v202, %v204
    %v214 = vsel %vm207, %v204, %v206
    %223 = vrot.lane.b32.xlu0 %v42, 32
    %v224 = vpop.permute.xlu0 %223
    %225 = vrot.lane.b32.xlu0 %v51, 32
    %v226 = vpop.permute.xlu0 %225
    %227 = vrot.lane.b32.xlu0 %v43, 32
    %v228 = vpop.permute.xlu0 %227
    %229 = vrot.lane.b32.xlu0 %v52, 32
    %v230 = vpop.permute.xlu0 %229
    %231 = vrot.lane.b32.xlu0 %v44, 32
    %v232 = vpop.permute.xlu0 %231
    %233 = vrot.lane.b32.xlu0 %v53, 32
    %v234 = vpop.permute.xlu0 %233
    %235 = vrot.lane.b32.xlu0 %v45, 32
    %v236 = vpop.permute.xlu0 %235
    %237 = vrot.lane.b32.xlu0 %v54, 32
    %v238 = vpop.permute.xlu0 %237
    %vm239 = vcmask 261120
    %v240 = vsel %vm239, %v224, %v226
    %v241 = vsel %vm239, %v226, %v228
    %v242 = vsel %vm239, %v228, %v230
    %v243 = vsel %vm239, %v230, %v232
    %v244 = vsel %vm239, %v232, %v234
    %v245 = vsel %vm239, %v234, %v236
    %v246 = vsel %vm239, %v236, %v238
    %255 = vrot.lane.b32.xlu0 %v59, 16
    %v256 = vpop.permute.xlu0 %255
    %257 = vrot.lane.b32.xlu0 %v42, 16
    %v258 = vpop.permute.xlu0 %257
    %259 = vrot.lane.b32.xlu0 %v60, 16
    %v260 = vpop.permute.xlu0 %259
    %261 = vrot.lane.b32.xlu0 %v43, 16
    %v262 = vpop.permute.xlu0 %261
    %263 = vrot.lane.b32.xlu0 %v61, 16
    %v264 = vpop.permute.xlu0 %263
    %265 = vrot.lane.b32.xlu0 %v44, 16
    %v266 = vpop.permute.xlu0 %265
    %267 = vrot.lane.b32.xlu0 %v62, 16
    %v268 = vpop.permute.xlu0 %267
    %269 = vrot.lane.b32.xlu0 %v45, 16
    %v270 = vpop.permute.xlu0 %269
    %vm271 = vcmask 130048
    %v272 = vsel %vm271, %v256, %v258
    %v273 = vsel %vm271, %v258, %v260
    %v274 = vsel %vm271, %v260, %v262
    %v275 = vsel %vm271, %v262, %v264
    %v276 = vsel %vm271, %v264, %v266
    %v277 = vsel %vm271, %v266, %v268
    %v278 = vsel %vm271, %v268, %v270
    %vm287 = vcmask 1043456
    %v288 = vsel %vm287, %v42, %v80
    %v289 = vsel %vm287, %v51, %v81
    %v290 = vsel %vm287, %v43, %v82
    %v291 = vsel %vm287, %v52, %v83
    %v292 = vsel %vm287, %v44, %v84
    %v293 = vsel %vm287, %v53, %v85
    %v294 = vsel %vm287, %v45, %v86
    %v295 = vsel %vm287, %v54, %v78
    %v296 = vsel %vm287, %v112, %v144
    %v297 = vsel %vm287, %v113, %v145
    %v298 = vsel %vm287, %v114, %v146
    %v299 = vsel %vm287, %v115, %v147
    %v300 = vsel %vm287, %v116, %v148
    %v301 = vsel %vm287, %v117, %v149
    %v302 = vsel %vm287, %v118, %v150
    %v303 = vsel %vm287, %v110, %v142
    %v304 = vsel %vm287, %v176, %v208
    %v305 = vsel %vm287, %v177, %v209
    %v306 = vsel %vm287, %v178, %v210
    %v307 = vsel %vm287, %v179, %v211
    %v308 = vsel %vm287, %v180, %v212
    %v309 = vsel %vm287, %v181, %v213
    %v310 = vsel %vm287, %v182, %v214
    %v311 = vsel %vm287, %v174, %v206
    %v312 = vsel %vm287, %v240, %v272
    %v313 = vsel %vm287, %v241, %v273
    %v314 = vsel %vm287, %v242, %v274
    %v315 = vsel %vm287, %v243, %v275
    %v316 = vsel %vm287, %v244, %v276
    %v317 = vsel %vm287, %v245, %v277
    %v318 = vsel %vm287, %v246, %v278
    %v319 = vsel %vm287, %v238, %v270
    %v320 = vld [vmem:[%s2] sm:$0xff]
    %322 = vset.pattern.permute.xlu0 0
    %323 = vperm.xlu0 %322, %v320
    %v324 = vpop.permute.xlu0 %323
    %v327 = vsel %vm239, %v46, 0
    %329 = vmatprep.subr.mxu0 %v289
    %330 = vmatpush1.msra.mxu0 %v288
    %331 = vmatprep.subr.mxu0 %v297
    %332 = vmatpush1.msra.mxu0 %v296
    %333 = vmatprep.subr.mxu0 %v305
    %334 = vmatpush1.msra.mxu0 %v304
    %335 = vmatprep.subr.mxu0 %v313
    %336 = vmatpush1.msra.mxu0 %v312
    %337 = vmatprep.subr.mxu0 0.0
    %338 = vmatpush1.msra.mxu0 0.0
    %339 = vmatprep.subr.mxu0 0.0
    %340 = vmatpush1.msra.mxu0 0.0
    %341 = vmatprep.subr.mxu0 0.0
    %342 = vmatpush1.msra.mxu0 0.0
    %343 = vmatprep.subr.mxu0 0.0
    %344 = vmatpush1.msra.mxu0 0.0
    %345 = vmatprep.subr.mxu0 0.0
    %346 = vmatpush1.msra.mxu0 0.0
    %347 = vmatprep.subr.mxu0 0.0
    %348 = vmatpush1.msra.mxu0 0.0
    %349 = vmatprep.subr.mxu0 0.0
    %350 = vmatpush1.msra.mxu0 0.0
    %351 = vmatprep.subr.mxu0 0.0
    %352 = vmatpush1.msra.mxu0 0.0
    %353 = vmatprep.subr.mxu0 0.0
    %354 = vmatpush1.msra.mxu0 0.0
    %355 = vmatprep.subr.mxu0 0.0
    %356 = vmatpush1.msra.mxu0 0.0
    %357 = vmatprep.subr.mxu0 0.0
    %358 = vmatpush1.msra.mxu0 0.0
    %359 = vmatprep.subr.mxu0 0.0
    %360 = vmatpush1.msra.mxu0 0.0
    %361 = vmatprep.subr.mxu0 0.0
    %362 = vmatpush1.msra.mxu0 0.0
    %363 = vmatprep.subr.mxu0 0.0
    %364 = vmatpush1.msra.mxu0 0.0
    %365 = vmatprep.subr.mxu0 0.0
    %366 = vmatpush1.msra.mxu0 0.0
    %367 = vmatprep.subr.mxu0 0.0
    %368 = vmatpush1.msra.mxu0 0.0
    %369 = vmatprep.subr.mxu0 0.0
    %370 = vmatpush1.msra.mxu0 0.0
    %371 = vmatprep.subr.mxu0 0.0
    %372 = vmatpush1.msra.mxu0 0.0
    %373 = vmatprep.subr.mxu0 0.0
    %374 = vmatpush1.msra.mxu0 0.0
    %375 = vmatprep.subr.mxu0 0.0
    %376 = vmatpush1.msra.mxu0 0.0
    %377 = vmatprep.subr.mxu0 0.0
    %378 = vmatpush1.msra.mxu0 0.0
    %379 = vmatprep.subr.mxu0 0.0
    %380 = vmatpush1.msra.mxu0 0.0
    %381 = vmatprep.subr.mxu0 0.0
    %382 = vmatpush1.msra.mxu0 0.0
    %383 = vmatprep.subr.mxu0 0.0
    %384 = vmatpush1.msra.mxu0 0.0
    %385 = vmatprep.subr.mxu0 0.0
    %386 = vmatpush1.msra.mxu0 0.0
    %387 = vmatprep.subr.mxu0 0.0
    %388 = vmatpush1.msra.mxu0 0.0
    %389 = vmatprep.subr.mxu0 0.0
    %390 = vmatpush1.msra.mxu0 0.0
    %391 = vmatprep.subr.mxu0 0.0
    %392 = vmatpush1.msra.mxu0 0.0
    %393 = vmatprep.mubr.f32.mxu0 0.0
    %394 = vmatmul.mubr.f32.gmra.mrb[0].mxu0 %v327
    %v395 = vpop.f32.mrb[0].mxu0
    %v396 = vadd.f32 %v324, %v395
    %v397 = vpop.f32.mrb[0].mxu0
    %v398 = vadd.f32 %v324, %v397
    %399 = vdwg.mxu0
    %400 = vmatprep.subr.mxu0 %v291
    %401 = vmatpush1.msra.mxu0 %v290
    %402 = vmatprep.subr.mxu0 %v299
    %403 = vmatpush1.msra.mxu0 %v298
    %404 = vmatprep.subr.mxu0 %v307
    %405 = vmatpush1.msra.mxu0 %v306
    %406 = vmatprep.subr.mxu0 %v315
    %407 = vmatpush1.msra.mxu0 %v314
    %408 = vmatprep.subr.mxu0 0.0
    %409 = vmatpush1.msra.mxu0 0.0
    %410 = vmatprep.subr.mxu0 0.0
    %411 = vmatpush1.msra.mxu0 0.0
    %412 = vmatprep.subr.mxu0 0.0
    %413 = vmatpush1.msra.mxu0 0.0
    %414 = vmatprep.subr.mxu0 0.0
    %415 = vmatpush1.msra.mxu0 0.0
    %416 = vmatprep.subr.mxu0 0.0
    %417 = vmatpush1.msra.mxu0 0.0
    %418 = vmatprep.subr.mxu0 0.0
    %419 = vmatpush1.msra.mxu0 0.0
    %420 = vmatprep.subr.mxu0 0.0
    %421 = vmatpush1.msra.mxu0 0.0
    %422 = vmatprep.subr.mxu0 0.0
    %423 = vmatpush1.msra.mxu0 0.0
    %424 = vmatprep.subr.mxu0 0.0
    %425 = vmatpush1.msra.mxu0 0.0
    %426 = vmatprep.subr.mxu0 0.0
    %427 = vmatpush1.msra.mxu0 0.0
    %428 = vmatprep.subr.mxu0 0.0
    %429 = vmatpush1.msra.mxu0 0.0
    %430 = vmatprep.subr.mxu0 0.0
    %431 = vmatpush1.msra.mxu0 0.0
    %432 = vmatprep.subr.mxu0 0.0
    %433 = vmatpush1.msra.mxu0 0.0
    %434 = vmatprep.subr.mxu0 0.0
    %435 = vmatpush1.msra.mxu0 0.0
    %436 = vmatprep.subr.mxu0 0.0
    %437 = vmatpush1.msra.mxu0 0.0
    %438 = vmatprep.subr.mxu0 0.0
    %439 = vmatpush1.msra.mxu0 0.0
    %440 = vmatprep.subr.mxu0 0.0
    %441 = vmatpush1.msra.mxu0 0.0
    %442 = vmatprep.subr.mxu0 0.0
    %443 = vmatpush1.msra.mxu0 0.0
    %444 = vmatprep.subr.mxu0 0.0
    %445 = vmatpush1.msra.mxu0 0.0
    %446 = vmatprep.subr.mxu0 0.0
    %447 = vmatpush1.msra.mxu0 0.0
    %448 = vmatprep.subr.mxu0 0.0
    %449 = vmatpush1.msra.mxu0 0.0
    %450 = vmatprep.subr.mxu0 0.0
    %451 = vmatpush1.msra.mxu0 0.0
    %452 = vmatprep.subr.mxu0 0.0
    %453 = vmatpush1.msra.mxu0 0.0
    %454 = vmatprep.subr.mxu0 0.0
    %455 = vmatpush1.msra.mxu0 0.0
    %456 = vmatprep.subr.mxu0 0.0
    %457 = vmatpush1.msra.mxu0 0.0
    %458 = vmatprep.subr.mxu0 0.0
    %459 = vmatpush1.msra.mxu0 0.0
    %460 = vmatprep.subr.mxu0 0.0
    %461 = vmatpush1.msra.mxu0 0.0
    %462 = vmatprep.subr.mxu0 0.0
    %463 = vmatpush1.msra.mxu0 0.0
    %464 = vmatprep.mubr.f32.mxu0 0.0
    %465 = vmatmul.mubr.f32.gmra.mrb[0].mxu0 %v327
    %v466 = vpop.f32.mrb[0].mxu0
    %v467 = vadd.f32 %v324, %v466
    %v468 = vpop.f32.mrb[0].mxu0
    %v469 = vadd.f32 %v324, %v468
    %470 = vdwg.mxu0
    %471 = vmatprep.subr.mxu0 %v293
    %472 = vmatpush1.msra.mxu0 %v292
    %473 = vmatprep.subr.mxu0 %v301
    %474 = vmatpush1.msra.mxu0 %v300
    %475 = vmatprep.subr.mxu0 %v309
    %476 = vmatpush1.msra.mxu0 %v308
    %477 = vmatprep.subr.mxu0 %v317
    %478 = vmatpush1.msra.mxu0 %v316
    %479 = vmatprep.subr.mxu0 0.0
    %480 = vmatpush1.msra.mxu0 0.0
    %481 = vmatprep.subr.mxu0 0.0
    %482 = vmatpush1.msra.mxu0 0.0
    %483 = vmatprep.subr.mxu0 0.0
    %484 = vmatpush1.msra.mxu0 0.0
    %485 = vmatprep.subr.mxu0 0.0
    %486 = vmatpush1.msra.mxu0 0.0
    %487 = vmatprep.subr.mxu0 0.0
    %488 = vmatpush1.msra.mxu0 0.0
    %489 = vmatprep.subr.mxu0 0.0
    %490 = vmatpush1.msra.mxu0 0.0
    %491 = vmatprep.subr.mxu0 0.0
    %492 = vmatpush1.msra.mxu0 0.0
    %493 = vmatprep.subr.mxu0 0.0
    %494 = vmatpush1.msra.mxu0 0.0
    %495 = vmatprep.subr.mxu0 0.0
    %496 = vmatpush1.msra.mxu0 0.0
    %497 = vmatprep.subr.mxu0 0.0
    %498 = vmatpush1.msra.mxu0 0.0
    %499 = vmatprep.subr.mxu0 0.0
    %500 = vmatpush1.msra.mxu0 0.0
    %501 = vmatprep.subr.mxu0 0.0
    %502 = vmatpush1.msra.mxu0 0.0
    %503 = vmatprep.subr.mxu0 0.0
    %504 = vmatpush1.msra.mxu0 0.0
    %505 = vmatprep.subr.mxu0 0.0
    %506 = vmatpush1.msra.mxu0 0.0
    %507 = vmatprep.subr.mxu0 0.0
    %508 = vmatpush1.msra.mxu0 0.0
    %509 = vmatprep.subr.mxu0 0.0
    %510 = vmatpush1.msra.mxu0 0.0
    %511 = vmatprep.subr.mxu0 0.0
    %512 = vmatpush1.msra.mxu0 0.0
    %513 = vmatprep.subr.mxu0 0.0
    %514 = vmatpush1.msra.mxu0 0.0
    %515 = vmatprep.subr.mxu0 0.0
    %516 = vmatpush1.msra.mxu0 0.0
    %517 = vmatprep.subr.mxu0 0.0
    %518 = vmatpush1.msra.mxu0 0.0
    %519 = vmatprep.subr.mxu0 0.0
    %520 = vmatpush1.msra.mxu0 0.0
    %521 = vmatprep.subr.mxu0 0.0
    %522 = vmatpush1.msra.mxu0 0.0
    %523 = vmatprep.subr.mxu0 0.0
    %524 = vmatpush1.msra.mxu0 0.0
    %525 = vmatprep.subr.mxu0 0.0
    %526 = vmatpush1.msra.mxu0 0.0
    %527 = vmatprep.subr.mxu0 0.0
    %528 = vmatpush1.msra.mxu0 0.0
    %529 = vmatprep.subr.mxu0 0.0
    %530 = vmatpush1.msra.mxu0 0.0
    %531 = vmatprep.subr.mxu0 0.0
    %532 = vmatpush1.msra.mxu0 0.0
    %533 = vmatprep.subr.mxu0 0.0
    %534 = vmatpush1.msra.mxu0 0.0
    %535 = vmatprep.mubr.f32.mxu0 0.0
    %536 = vmatmul.mubr.f32.gmra.mrb[0].mxu0 %v327
    %v537 = vpop.f32.mrb[0].mxu0
    %v538 = vadd.f32 %v324, %v537
    %v539 = vpop.f32.mrb[0].mxu0
    %v540 = vadd.f32 %v324, %v539
    %541 = vdwg.mxu0
    %542 = vmatprep.subr.mxu0 %v295
    %543 = vmatpush1.msra.mxu0 %v294
    %544 = vmatprep.subr.mxu0 %v303
    %545 = vmatpush1.msra.mxu0 %v302
    %546 = vmatprep.subr.mxu0 %v311
    %547 = vmatpush1.msra.mxu0 %v310
    %548 = vmatprep.subr.mxu0 %v319
    %549 = vmatpush1.msra.mxu0 %v318
    %550 = vmatprep.subr.mxu0 0.0
    %551 = vmatpush1.msra.mxu0 0.0
    %552 = vmatprep.subr.mxu0 0.0
    %553 = vmatpush1.msra.mxu0 0.0
    %554 = vmatprep.subr.mxu0 0.0
    %555 = vmatpush1.msra.mxu0 0.0
    %556 = vmatprep.subr.mxu0 0.0
    %557 = vmatpush1.msra.mxu0 0.0
    %558 = vmatprep.subr.mxu0 0.0
    %559 = vmatpush1.msra.mxu0 0.0
    %560 = vmatprep.subr.mxu0 0.0
    %561 = vmatpush1.msra.mxu0 0.0
    %562 = vmatprep.subr.mxu0 0.0
    %563 = vmatpush1.msra.mxu0 0.0
    %564 = vmatprep.subr.mxu0 0.0
    %565 = vmatpush1.msra.mxu0 0.0
    %566 = vmatprep.subr.mxu0 0.0
    %567 = vmatpush1.msra.mxu0 0.0
    %568 = vmatprep.subr.mxu0 0.0
    %569 = vmatpush1.msra.mxu0 0.0
    %570 = vmatprep.subr.mxu0 0.0
    %571 = vmatpush1.msra.mxu0 0.0
    %572 = vmatprep.subr.mxu0 0.0
    %573 = vmatpush1.msra.mxu0 0.0
    %574 = vmatprep.subr.mxu0 0.0
    %575 = vmatpush1.msra.mxu0 0.0
    %576 = vmatprep.subr.mxu0 0.0
    %577 = vmatpush1.msra.mxu0 0.0
    %578 = vmatprep.subr.mxu0 0.0
    %579 = vmatpush1.msra.mxu0 0.0
    %580 = vmatprep.subr.mxu0 0.0
    %581 = vmatpush1.msra.mxu0 0.0
    %582 = vmatprep.subr.mxu0 0.0
    %583 = vmatpush1.msra.mxu0 0.0
    %584 = vmatprep.subr.mxu0 0.0
    %585 = vmatpush1.msra.mxu0 0.0
    %586 = vmatprep.subr.mxu0 0.0
    %587 = vmatpush1.msra.mxu0 0.0
    %588 = vmatprep.subr.mxu0 0.0
    %589 = vmatpush1.msra.mxu0 0.0
    %590 = vmatprep.subr.mxu0 0.0
    %591 = vmatpush1.msra.mxu0 0.0
    %592 = vmatprep.subr.mxu0 0.0
    %593 = vmatpush1.msra.mxu0 0.0
    %594 = vmatprep.subr.mxu0 0.0
    %595 = vmatpush1.msra.mxu0 0.0
    %596 = vmatprep.subr.mxu0 0.0
    %597 = vmatpush1.msra.mxu0 0.0
    %598 = vmatprep.subr.mxu0 0.0
    %599 = vmatpush1.msra.mxu0 0.0
    %600 = vmatprep.subr.mxu0 0.0
    %601 = vmatpush1.msra.mxu0 0.0
    %602 = vmatprep.subr.mxu0 0.0
    %603 = vmatpush1.msra.mxu0 0.0
    %604 = vmatprep.subr.mxu0 0.0
    %605 = vmatpush1.msra.mxu0 0.0
    %606 = vmatprep.mubr.f32.mxu0 0.0
    %607 = vmatmul.mubr.f32.gmra.mrb[0].mxu0 %v327
    %v608 = vpop.f32.mrb[0].mxu0
    %v609 = vadd.f32 %v324, %v608
    %v610 = vpop.f32.mrb[0].mxu0
    %v611 = vadd.f32 %v324, %v610
    %612 = vdwg.mxu0
    %v613 = vmul.f32 %v396, %v396
    %v614 = vmul.f32 %v398, %v398
    %v615 = vmul.f32 %v467, %v467
    %v616 = vmul.f32 %v469, %v469
    %v617 = vmul.f32 %v538, %v538
    %v618 = vmul.f32 %v540, %v540
    %v619 = vmul.f32 %v609, %v609
    %v620 = vmul.f32 %v611, %v611
    %629 = vrot.lane.b32.xlu0 %v613, 112
    %v630 = vpop.permute.xlu0 %629
    %631 = vrot.lane.b32.xlu0 %v614, 112
    %v632 = vpop.permute.xlu0 %631
    %633 = vrot.lane.b32.xlu0 %v615, 112
    %v634 = vpop.permute.xlu0 %633
    %635 = vrot.lane.b32.xlu0 %v616, 112
    %v636 = vpop.permute.xlu0 %635
    %637 = vrot.lane.b32.xlu0 %v617, 112
    %v638 = vpop.permute.xlu0 %637
    %639 = vrot.lane.b32.xlu0 %v618, 112
    %v640 = vpop.permute.xlu0 %639
    %641 = vrot.lane.b32.xlu0 %v619, 112
    %v642 = vpop.permute.xlu0 %641
    %643 = vrot.lane.b32.xlu0 %v620, 112
    %v644 = vpop.permute.xlu0 %643
    %v645 = vsel %vm79, %v630, %v632
    %v646 = vsel %vm79, %v632, %v634
    %v647 = vsel %vm79, %v634, %v636
    %v648 = vsel %vm79, %v636, %v638
    %v649 = vsel %vm79, %v638, %v640
    %v650 = vsel %vm79, %v640, %v642
    %v651 = vsel %vm79, %v642, %v644
    %v659 = vadd.f32 %v613, %v645
    %v660 = vadd.f32 %v614, %v646
    %v661 = vadd.f32 %v615, %v647
    %v662 = vadd.f32 %v616, %v648
    %v663 = vadd.f32 %v617, %v649
    %v664 = vadd.f32 %v618, %v650
    %v665 = vadd.f32 %v619, %v651
    %673 = vrot.lane.b32.xlu0 %v659, 96
    %v674 = vpop.permute.xlu0 %673
    %675 = vrot.lane.b32.xlu0 %v660, 96
    %v676 = vpop.permute.xlu0 %675
    %677 = vrot.lane.b32.xlu0 %v661, 96
    %v678 = vpop.permute.xlu0 %677
    %679 = vrot.lane.b32.xlu0 %v662, 96
    %v680 = vpop.permute.xlu0 %679
    %681 = vrot.lane.b32.xlu0 %v663, 96
    %v682 = vpop.permute.xlu0 %681
    %683 = vrot.lane.b32.xlu0 %v664, 96
    %v684 = vpop.permute.xlu0 %683
    %685 = vrot.lane.b32.xlu0 %v665, 96
    %v686 = vpop.permute.xlu0 %685
    %v687 = vsel %vm111, %v674, %v676
    %v688 = vsel %vm111, %v676, %v678
    %v689 = vsel %vm111, %v678, %v680
    %v690 = vsel %vm111, %v680, %v682
    %v691 = vsel %vm111, %v682, %v684
    %v692 = vsel %vm111, %v684, %v686
    %v700 = vadd.f32 %v659, %v687
    %v701 = vadd.f32 %v660, %v688
    %v702 = vadd.f32 %v661, %v689
    %v703 = vadd.f32 %v662, %v690
    %v704 = vadd.f32 %v663, %v691
    %v705 = vadd.f32 %v664, %v692
    %v706 = vadd.f32 %v665, %v686
    %714 = vrot.lane.b32.xlu0 %v700, 64
    %v715 = vpop.permute.xlu0 %714
    %716 = vrot.lane.b32.xlu0 %v701, 64
    %v717 = vpop.permute.xlu0 %716
    %718 = vrot.lane.b32.xlu0 %v702, 64
    %v719 = vpop.permute.xlu0 %718
    %720 = vrot.lane.b32.xlu0 %v703, 64
    %v721 = vpop.permute.xlu0 %720
    %722 = vrot.lane.b32.xlu0 %v704, 64
    %v723 = vpop.permute.xlu0 %722
    %724 = vrot.lane.b32.xlu0 %v705, 64
    %v725 = vpop.permute.xlu0 %724
    %726 = vrot.lane.b32.xlu0 %v706, 64
    %v727 = vpop.permute.xlu0 %726
    %v728 = vsel %vm175, %v715, %v717
    %v729 = vsel %vm175, %v717, %v719
    %v730 = vsel %vm175, %v719, %v721
    %v731 = vsel %vm175, %v721, %v723
    %v732 = vsel %vm175, %v723, %v725
    %v733 = vsel %vm175, %v725, %v727
    %v741 = vadd.f32 %v700, %v728
    %v742 = vadd.f32 %v701, %v729
    %v743 = vadd.f32 %v702, %v730
    %v744 = vadd.f32 %v703, %v731
    %v745 = vadd.f32 %v704, %v732
    %v746 = vadd.f32 %v705, %v733
    %v747 = vadd.f32 %v706, %v727
    %v748 = vmul.f32 %v741, 0.125
    %v749 = vmul.f32 %v742, 0.125
    %v750 = vmul.f32 %v743, 0.125
    %v751 = vmul.f32 %v744, 0.125
    %v752 = vmul.f32 %v745, 0.125
    %v753 = vmul.f32 %v746, 0.125
    %v754 = vmul.f32 %v747, 0.125
    %v755 = vmax.f32 %v748, 1e-06
    %v756 = vmax.f32 %v749, 1e-06
    %v757 = vmax.f32 %v750, 1e-06
    %v758 = vmax.f32 %v751, 1e-06
    %v759 = vmax.f32 %v752, 1e-06
    %v760 = vmax.f32 %v753, 1e-06
    %v761 = vmax.f32 %v754, 1e-06
    %v762 = vlog2.pop %v755
    %v763 = vmul.f32 %v762, 0.6931472
    %v764 = vlog2.pop %v756
    %v765 = vmul.f32 %v764, 0.6931472
    %v766 = vlog2.pop %v757
    %v767 = vmul.f32 %v766, 0.6931472
    %v768 = vlog2.pop %v758
    %v769 = vmul.f32 %v768, 0.6931472
    %v770 = vlog2.pop %v759
    %v771 = vmul.f32 %v770, 0.6931472
    %v772 = vlog2.pop %v760
    %v773 = vmul.f32 %v772, 0.6931472
    %v774 = vlog2.pop %v761
    %v775 = vmul.f32 %v774, 0.6931472
    %v776 = vld [vmem:[#allocation5] sm:$0xff]
    %v777 = vld [vmem:[#allocation5 + $0x8] sm:$0xff]
    %v778 = vld [vmem:[#allocation5 + $0x10] sm:$0xff]
    %v779 = vld [vmem:[#allocation5 + $0x18] sm:$0xff]
    %v780 = vld [vmem:[#allocation5 + $0x20] sm:$0xff]
    %v781 = vld [vmem:[#allocation5 + $0x28] sm:$0xff]
    %v782 = vld [vmem:[#allocation5 + $0x30] sm:$0xff]
    %v783 = vmul.f32 %v763, %v776
    %v784 = vmul.f32 %v765, %v777
    %v785 = vmul.f32 %v767, %v778
    %v786 = vmul.f32 %v769, %v779
    %v787 = vmul.f32 %v771, %v780
    %v788 = vmul.f32 %v773, %v781
    %v789 = vmul.f32 %v775, %v782
    %v790 = vrot.slane %v783, 4
    %v791 = vadd.f32 %v783, %v790
    %v792 = vrot.slane %v791, 2
    %v793 = vadd.f32 %v791, %v792
    %v794 = vrot.slane %v793, 1
    %v795 = vadd.f32 %v793, %v794
    %v796 = vrot.slane %v784, 4
    %v797 = vadd.f32 %v784, %v796
    %v798 = vrot.slane %v797, 2
    %v799 = vadd.f32 %v797, %v798
    %v800 = vrot.slane %v799, 1
    %v801 = vadd.f32 %v799, %v800
    %v802 = vrot.slane %v785, 4
    %v803 = vadd.f32 %v785, %v802
    %v804 = vrot.slane %v803, 2
    %v805 = vadd.f32 %v803, %v804
    %v806 = vrot.slane %v805, 1
    %v807 = vadd.f32 %v805, %v806
    %v808 = vrot.slane %v786, 4
    %v809 = vadd.f32 %v786, %v808
    %v810 = vrot.slane %v809, 2
    %v811 = vadd.f32 %v809, %v810
    %v812 = vrot.slane %v811, 1
    %v813 = vadd.f32 %v811, %v812
    %v814 = vrot.slane %v787, 4
    %v815 = vadd.f32 %v787, %v814
    %v816 = vrot.slane %v815, 2
    %v817 = vadd.f32 %v815, %v816
    %v818 = vrot.slane %v817, 1
    %v819 = vadd.f32 %v817, %v818
    %v820 = vrot.slane %v788, 4
    %v821 = vadd.f32 %v788, %v820
    %v822 = vrot.slane %v821, 2
    %v823 = vadd.f32 %v821, %v822
    %v824 = vrot.slane %v823, 1
    %v825 = vadd.f32 %v823, %v824
    %v826 = vsel %vm239, %v789, 0.0
    %v827 = vrot.slane %v826, 4
    %v828 = vadd.f32 %v826, %v827
    %v829 = vrot.slane %v828, 2
    %v830 = vadd.f32 %v828, %v829
    %v831 = vrot.slane %v830, 1
    %v832 = vadd.f32 %v830, %v831
    %840 = vrot.lane.b32.xlu0 %v795, 112
    %v841 = vpop.permute.xlu0 %840
    %842 = vrot.lane.b32.xlu0 %v801, 112
    %v843 = vpop.permute.xlu0 %842
    %844 = vrot.lane.b32.xlu0 %v807, 112
    %v845 = vpop.permute.xlu0 %844
    %846 = vrot.lane.b32.xlu0 %v813, 112
    %v847 = vpop.permute.xlu0 %846
    %848 = vrot.lane.b32.xlu0 %v819, 112
    %v849 = vpop.permute.xlu0 %848
    %850 = vrot.lane.b32.xlu0 %v825, 112
    %v851 = vpop.permute.xlu0 %850
    %852 = vrot.lane.b32.xlu0 %v832, 112
    %v853 = vpop.permute.xlu0 %852
    %v854 = vsel %vm79, %v841, %v843
    %v855 = vsel %vm79, %v843, %v845
    %v856 = vsel %vm79, %v845, %v847
    %v857 = vsel %vm79, %v847, %v849
    %v858 = vsel %vm79, %v849, %v851
    %v859 = vsel %vm79, %v851, %v853
    %v867 = vadd.f32 %v795, %v854
    %v868 = vadd.f32 %v801, %v855
    %v869 = vadd.f32 %v807, %v856
    %v870 = vadd.f32 %v813, %v857
    %v871 = vadd.f32 %v819, %v858
    %v872 = vadd.f32 %v825, %v859
    %v873 = vadd.f32 %v832, %v853
    %881 = vrot.lane.b32.xlu0 %v867, 96
    %v882 = vpop.permute.xlu0 %881
    %883 = vrot.lane.b32.xlu0 %v868, 96
    %v884 = vpop.permute.xlu0 %883
    %885 = vrot.lane.b32.xlu0 %v869, 96
    %v886 = vpop.permute.xlu0 %885
    %887 = vrot.lane.b32.xlu0 %v870, 96
    %v888 = vpop.permute.xlu0 %887
    %889 = vrot.lane.b32.xlu0 %v871, 96
    %v890 = vpop.permute.xlu0 %889
    %891 = vrot.lane.b32.xlu0 %v872, 96
    %v892 = vpop.permute.xlu0 %891
    %893 = vrot.lane.b32.xlu0 %v873, 96
    %v894 = vpop.permute.xlu0 %893
    %v895 = vsel %vm111, %v882, %v884
    %v896 = vsel %vm111, %v884, %v886
    %v897 = vsel %vm111, %v886, %v888
    %v898 = vsel %vm111, %v888, %v890
    %v899 = vsel %vm111, %v890, %v892
    %v900 = vsel %vm111, %v892, %v894
    %v907 = vadd.f32 %v867, %v895
    %v908 = vadd.f32 %v868, %v896
    %v909 = vadd.f32 %v869, %v897
    %v910 = vadd.f32 %v870, %v898
    %v911 = vadd.f32 %v871, %v899
    %v912 = vadd.f32 %v872, %v900
    %919 = vrot.lane.b32.xlu0 %v907, 64
    %v920 = vpop.permute.xlu0 %919
    %921 = vrot.lane.b32.xlu0 %v908, 64
    %v922 = vpop.permute.xlu0 %921
    %923 = vrot.lane.b32.xlu0 %v909, 64
    %v924 = vpop.permute.xlu0 %923
    %925 = vrot.lane.b32.xlu0 %v910, 64
    %v926 = vpop.permute.xlu0 %925
    %927 = vrot.lane.b32.xlu0 %v911, 64
    %v928 = vpop.permute.xlu0 %927
    %929 = vrot.lane.b32.xlu0 %v912, 64
    %v930 = vpop.permute.xlu0 %929
    %v931 = vsel %vm175, %v920, %v922
    %v932 = vsel %vm175, %v922, %v924
    %v933 = vsel %vm175, %v924, %v926
    %v934 = vsel %vm175, %v926, %v928
    %v935 = vsel %vm175, %v928, %v930
    %v942 = vadd.f32 %v907, %v931
    %v943 = vadd.f32 %v908, %v932
    %v944 = vadd.f32 %v909, %v933
    %v945 = vadd.f32 %v910, %v934
    %v946 = vadd.f32 %v911, %v935
    %v947 = vadd.f32 %v912, %v930
    %v948 = vadd.f32 %v942, %v943
    %v949 = vadd.f32 %v944, %v945
    %v950 = vadd.f32 %v946, %v947
    %952 = vrot.lane.b32.xlu0 %v948, 96
    %v953 = vpop.permute.xlu0 %952
    %v955 = vadd.f32 %v867, %v953
    %v956 = vadd.f32 %v949, %v950
    %958 = vrot.lane.b32.xlu0 %v956, 96
    %v959 = vpop.permute.xlu0 %958
    %v961 = vadd.f32 %v955, %v959
    %vm962 = vcmask 122880
    %963 = vst.msk [vmem:[#allocation7] sm:$0x1] %vm962, %v961
    // Predicated region
    $region26: #{tpu_custom_call.1} parent=1 // pred_check
      _
    $region27: #{tpu_custom_call.1} parent=1 // pred_check_branch
      %965 = sbr.rel (0) target = $region29
    $region28: #{tpu_custom_call.1} parent=1 // pred_region
      %s967 = ssub.s32 16, 16
      %968 = vsyncadd [#allocation4], %s967
      %s970 = sshll.u32 [#allocation7], 4
      %s971 = int_to_ptr.vmem [resolvable:$true] %s970
      %973 = dma.vmem_to_hbm [thread:$0]  %s971, 16, %s4, [#allocation4]
    $region29: #{tpu_custom_call.1} parent=1 // pred_fallthru
      _
    // Predicated region
    $region30: #{tpu_custom_call.1} parent=1 // pred_check
      _
    $region31: #{tpu_custom_call.1} parent=1 // pred_check_branch
      %975 = sbr.rel (0) target = $region33
    $region32: #{tpu_custom_call.1} parent=1 // pred_region
      %976 = dma.done [#allocation4], 16
    $region33: #{tpu_custom_call.1} parent=1 // pred_fallthru
      _
    %977 = vsyncpa [#allocation3], 1
    %978 = vsyncpa [#allocation6], 1
    %979 = vsyncpa [#allocation4], 1

</llo_original>
